<compile_context>
chip_gen: v7x
topology: tpu7x:2x2x1
jax: 0.10.0
libtpu: 0.0.40
codegen_flags: <defaults>
</compile_context>

<pallas_src>
import functools

import jax
import jax.numpy as jnp
import numpy as np
from jax.experimental import pallas as pl
from jax.experimental.pallas import tpu as pltpu


def _round_up(n, m):
    return ((n + m - 1) // m) * m


def learner_kernel(x_ref, w1_ref, b1_ref, w2_ref, b2_ref, o_ref, *, num_joints):
    # x_ref : (TB*J, F)    w1_ref : (F, Hp)    b1_ref : (1, Hp)
    # w2_ref: (Hp, Dp)     b2_ref : (1, Dp)    o_ref  : (TB, Dp)
    rows = x_ref.shape[0]
    tb = rows // num_joints

    # MLP: one big (TB*J, F) @ (F, Hp) matmul on the MXU, bias + ReLU on the VPU.
    h = jnp.dot(x_ref[...], w1_ref[...], preferred_element_type=jnp.float32)
    h = jnp.maximum(h + b1_ref[...], 0.0)

    # Mean over the joints axis (dim=1 in PyTorch): the 1/J scale is folded
    # into w2 in the wrapper, so a plain sublane sum is enough here.
    hp = h.shape[-1]
    g = h.reshape(tb, num_joints, hp).sum(axis=1)        # (TB, Hp)

    # Output linear (lane-dense, Dp multiple of 128) + bias.
    o_ref[...] = (
        jnp.dot(g, w2_ref[...], preferred_element_type=jnp.float32) + b2_ref[...]
    )


def learner_forward(x, adj, mlp_w, mlp_b, gcn_w, out_w, out_b, *, block_b=256):
    """Mirrors Learner.forward(x, adj). adj and gcn_w are unused (as in PyTorch)."""
    del adj, gcn_w  # unused in the reference forward pass
    B, J, F = x.shape
    H = mlp_w.shape[0]           # mlp_hidden (== gcn_hidden required by forward)
    D = out_w.shape[0]           # output_embedding_dim

    # Lane-dense padded feature dims (multiples of 128).
    Hp = _round_up(H, 128)
    Dp = _round_up(D, 128)

    # Batch tile: whole batch if small, otherwise a sublane-aligned tile.
    if B <= block_b:
        TB = B
    else:
        TB = (block_b // 8) * 8

    # Wrapper-side layout plumbing (all free XLA reshapes / pads):
    x2 = x.reshape(B * J, F).astype(jnp.float32)
    w1 = jnp.zeros((F, Hp), jnp.float32).at[:, :H].set(mlp_w.T.astype(jnp.float32))
    b1 = jnp.zeros((1, Hp), jnp.float32).at[0, :H].set(mlp_b.astype(jnp.float32))
    # Fold the 1/J joint-mean into the (pre-transposed) output weights.
    w2 = jnp.zeros((Hp, Dp), jnp.float32).at[:H, :D].set(
        out_w.T.astype(jnp.float32) / float(J))
    b2 = jnp.zeros((1, Dp), jnp.float32).at[0, :D].set(out_b.astype(jnp.float32))

    grid = (pl.cdiv(B, TB),)

    flops = 2 * B * J * F * Hp + 2 * B * Hp * Dp
    bytes_accessed = 4 * (B * J * F + F * Hp + Hp + Hp * Dp + Dp + B * Dp)

    out_padded = pl.pallas_call(
        functools.partial(learner_kernel, num_joints=J),
        out_shape=jax.ShapeDtypeStruct((B, Dp), jnp.float32),
        grid=grid,
        in_specs=[
            pl.BlockSpec((TB * J, F), lambda i: (i, 0)),   # x tile (pipelined)
            pl.BlockSpec((F, Hp), lambda i: (0, 0)),       # resident weights
            pl.BlockSpec((1, Hp), lambda i: (0, 0)),
            pl.BlockSpec((Hp, Dp), lambda i: (0, 0)),
            pl.BlockSpec((1, Dp), lambda i: (0, 0)),
        ],
        out_specs=pl.BlockSpec((TB, Dp), lambda i: (i, 0)),
        compiler_params=pltpu.CompilerParams(
            dimension_semantics=("parallel",),
            vmem_limit_bytes=48 * 1024 * 1024,
        ),
        cost_estimate=pl.CostEstimate(
            flops=flops, transcendentals=0, bytes_accessed=bytes_accessed),
    )(x2, w1, b1, w2, b2)

    return out_padded[:, :D]


def kaiming_normal(key, shape):
    # torch.nn.init.kaiming_normal_ default: fan_in = shape[1], gain = sqrt(2)
    fan_in = shape[1]
    std = np.sqrt(2.0 / fan_in)
    return jax.random.normal(key, shape, dtype=jnp.float32) * std


if __name__ == "__main__":
    # Module hyperparameters (small, consistent with the forward pass).
    input_features = 32
    mlp_hidden = 64
    gcn_hidden = 64          # must equal mlp_hidden for the reference forward to work
    output_embedding_dim = 16
    num_joints = 8
    batch = 16

    key = jax.random.PRNGKey(0)
    k_x, k_adj, k_w1, k_wg, k_wo = jax.random.split(key, 5)

    # Deterministic parameter init (shapes from Learner.__init__).
    mlp_weight = kaiming_normal(k_w1, (mlp_hidden, input_features))
    mlp_bias = jnp.zeros((mlp_hidden,), jnp.float32)
    gcn_weight = kaiming_normal(k_wg, (gcn_hidden, mlp_hidden))      # unused in forward
    output_weight = kaiming_normal(k_wo, (output_embedding_dim, gcn_hidden))
    output_bias = jnp.zeros((output_embedding_dim,), jnp.float32)

    # Inputs.
    x = jax.random.normal(k_x, (batch, num_joints, input_features), dtype=jnp.float32)
    adj = jax.random.normal(k_adj, (num_joints, num_joints), dtype=jnp.float32)  # unused

    # block_b=8 so the example exercises the batch grid (grid=(2,)).
    out = learner_forward(x, adj, mlp_weight, mlp_bias, gcn_weight,
                          output_weight, output_bias, block_b=8)
    jax.block_until_ready(out)

    # Pure-JAX reference of the exact PyTorch semantics.
    h_ref = jnp.maximum(jnp.einsum("bjf,hf->bjh", x, mlp_weight) + mlp_bias, 0.0)
    g_ref = h_ref.mean(axis=1)
    ref = jnp.einsum("bh,dh->bd", g_ref, output_weight) + output_bias

    assert out.shape == (batch, output_embedding_dim)
    assert np.allclose(np.asarray(out), np.asarray(ref), rtol=1e-4, atol=1e-4)

    print("KERNEL_OK")
</pallas_src>

<mosaic_0001>
module attributes {stable_mosaic.version = 11 : i64} {
  func.func @learner_kernel(%arg0: i32, %arg1: memref<64x32xf32, #tpu.memory_space<vmem>>, %arg2: memref<32x128xf32, #tpu.memory_space<vmem>>, %arg3: memref<1x128xf32, #tpu.memory_space<vmem>>, %arg4: memref<128x128xf32, #tpu.memory_space<vmem>>, %arg5: memref<1x128xf32, #tpu.memory_space<vmem>>, %arg6: memref<8x128xf32, #tpu.memory_space<vmem>>) attributes {dimension_semantics = [#tpu.dimension_semantics<parallel>], iteration_bounds = array<i64: 2>, scalar_prefetch = 0 : i64, scratch_operands = 0 : i64, tpu.core_type = #tpu.core_type<tc>, window_params = [{transform_indices = @transform_0, window_bounds = array<i64: 64, 32>}, {pipeline_mode = #tpu.pipeline_mode<synchronous>, transform_indices = @transform_1, window_bounds = array<i64: 32, 128>}, {pipeline_mode = #tpu.pipeline_mode<synchronous>, transform_indices = @transform_2, window_bounds = array<i64: 1, 128>}, {pipeline_mode = #tpu.pipeline_mode<synchronous>, transform_indices = @transform_3, window_bounds = array<i64: 128, 128>}, {pipeline_mode = #tpu.pipeline_mode<synchronous>, transform_indices = @transform_4, window_bounds = array<i64: 1, 128>}, {transform_indices = @transform_5, window_bounds = array<i64: 8, 128>}]} {
    %c0 = arith.constant 0 : index
    %c0_0 = arith.constant 0 : index
    %0 = vector.load %arg1[%c0, %c0_0] : memref<64x32xf32, #tpu.memory_space<vmem>>, vector<64x32xf32>
    %c0_1 = arith.constant 0 : index
    %c0_2 = arith.constant 0 : index
    %1 = vector.load %arg2[%c0_1, %c0_2] : memref<32x128xf32, #tpu.memory_space<vmem>>, vector<32x128xf32>
    %cst = arith.constant dense<0.000000e+00> : vector<64x128xf32>
    %2 = tpu.matmul %0, %1, %cst {dimension_numbers = #tpu.dot_dimension_numbers<[1], [0], [0], [1], [0, 0, 1, 1], [], []>} : vector<64x32xf32>, vector<32x128xf32>, vector<64x128xf32> -> vector<64x128xf32>
    %c0_3 = arith.constant 0 : index
    %c0_4 = arith.constant 0 : index
    %3 = vector.load %arg3[%c0_3, %c0_4] : memref<1x128xf32, #tpu.memory_space<vmem>>, vector<1x128xf32>
    %4 = vector.broadcast %3 : vector<1x128xf32> to vector<64x128xf32>
    %5 = arith.addf %2, %4 : vector<64x128xf32>
    %cst_5 = arith.constant 0.000000e+00 : f32
    %6 = vector.broadcast %cst_5 : f32 to vector<64x128xf32>
    %7 = arith.maximumf %5, %6 : vector<64x128xf32>
    %8 = vector.shape_cast %7 : vector<64x128xf32> to vector<8x8x128xf32>
    %cst_6 = arith.constant dense<0.000000e+00> : vector<8x128xf32>
    %9 = vector.multi_reduction <add>, %8, %cst_6 [1] : vector<8x8x128xf32> to vector<8x128xf32>
    %c0_7 = arith.constant 0 : index
    %c0_8 = arith.constant 0 : index
    %10 = vector.load %arg4[%c0_7, %c0_8] : memref<128x128xf32, #tpu.memory_space<vmem>>, vector<128x128xf32>
    %cst_9 = arith.constant dense<0.000000e+00> : vector<8x128xf32>
    %11 = tpu.matmul %9, %10, %cst_9 {dimension_numbers = #tpu.dot_dimension_numbers<[1], [0], [0], [1], [0, 0, 1, 1], [], []>} : vector<8x128xf32>, vector<128x128xf32>, vector<8x128xf32> -> vector<8x128xf32>
    %c0_10 = arith.constant 0 : index
    %c0_11 = arith.constant 0 : index
    %12 = vector.load %arg5[%c0_10, %c0_11] : memref<1x128xf32, #tpu.memory_space<vmem>>, vector<1x128xf32>
    %13 = vector.broadcast %12 : vector<1x128xf32> to vector<8x128xf32>
    %14 = arith.addf %11, %13 : vector<8x128xf32>
    %c0_12 = arith.constant 0 : index
    %c0_13 = arith.constant 0 : index
    %15 = vector.load %arg6[%c0_12, %c0_13] : memref<8x128xf32, #tpu.memory_space<vmem>>, vector<8x128xf32>
    tpu.vector_store %arg6[%c0_12, %c0_13], %14 {strides = array<i32>} : memref<8x128xf32, #tpu.memory_space<vmem>>, vector<8x128xf32>,
    return
  }
  func.func @transform_0(%arg0: i32) -> (i32, i32) {
    %c0_i32 = arith.constant 0 : i32
    %c0_i32_0 = arith.constant 0 : i32
    return %arg0, %c0_i32 : i32, i32
  }
  func.func @transform_1(%arg0: i32) -> (i32, i32) {
    %c0_i32 = arith.constant 0 : i32
    %c0_i32_0 = arith.constant 0 : i32
    %c0_i32_1 = arith.constant 0 : i32
    return %c0_i32, %c0_i32_0 : i32, i32
  }
  func.func @transform_2(%arg0: i32) -> (i32, i32) {
    %c0_i32 = arith.constant 0 : i32
    %c0_i32_0 = arith.constant 0 : i32
    %c0_i32_1 = arith.constant 0 : i32
    return %c0_i32, %c0_i32_0 : i32, i32
  }
  func.func @transform_3(%arg0: i32) -> (i32, i32) {
    %c0_i32 = arith.constant 0 : i32
    %c0_i32_0 = arith.constant 0 : i32
    %c0_i32_1 = arith.constant 0 : i32
    return %c0_i32, %c0_i32_0 : i32, i32
  }
  func.func @transform_4(%arg0: i32) -> (i32, i32) {
    %c0_i32 = arith.constant 0 : i32
    %c0_i32_0 = arith.constant 0 : i32
    %c0_i32_1 = arith.constant 0 : i32
    return %c0_i32, %c0_i32_0 : i32, i32
  }
  func.func @transform_5(%arg0: i32) -> (i32, i32) {
    %c0_i32 = arith.constant 0 : i32
    %c0_i32_0 = arith.constant 0 : i32
    return %arg0, %c0_i32 : i32, i32
  }
}

</mosaic_0001>

<llo_original>
// kernel: tpu_custom_call.1
$region0: #{tpu_custom_call.1}
  #allocation0 [shape = 'u32[]', space=smem, size = 0x4, offset = 0x4, fixed_abs, tag = 'smem constant byte address 0x4 - core index']
  #allocation1 [shape = 'u32[144,128]{1,0:T(1,128)}', space=vmem, size = 0x12000, scoped, tag = 'internal scratch']
  %s0 = inlined_call_operand.vmem [shape: f32[128,32], index: 0, kind: input, shape index: {}]
  %s1 = inlined_call_operand.vmem [shape: f32[32,128], index: 1, kind: input, shape index: {}]
  %s2 = inlined_call_operand.vmem [shape: f32[1,128], index: 2, kind: input, shape index: {}]
  %s3 = inlined_call_operand.vmem [shape: f32[128,128], index: 3, kind: input, shape index: {}]
  %s4 = inlined_call_operand.vmem [shape: f32[1,128], index: 4, kind: input, shape index: {}]
  %s5 = inlined_call_operand.hbm [shape: f32[16,128], index: 5, kind: output, shape index: {}]
  %s6 = sld [smem:[#allocation0]]
  $region53: #{tpu_custom_call.1} parent=0
    _
  %s8 = ssub.s32 1, %s6
  %s9 = scalar_select 0, %s8, %s6
  $region1: #{tpu_custom_call.1} parent=0
    #allocation2 [shape = 'u8[8192]{0}', space=vmem, size = 0x2000, scoped, tag = 'output window, operand 0']
    #allocation3 [shape = 's32[2]{0}', space=sflag, size = 0x8, scoped, tag = 'scoped memory for tpu_custom_call.1']
    %10 = vsyncpa [#allocation3], 0
    %s11 = scalar_lea.sflag [#allocation3], 1
    %12 = vsyncpa %s11, 0
    loop: start=0, step=1, limit=4
    $region2: #{tpu_custom_call.1} parent=1 // loop_pre_header
      _
    $region3: #{tpu_custom_call.1} parent=1 // loop_header
      %s14 = sphi 0, %s18
      %p15 = scmp.ge.s32.totalorder %s14, 4
      %s24 = sphi 0, %s26
      %s27 = sphi 0, %s24
      %s28 = sphi 0, %s27
      %s44 = sphi 0, %s28
      %s48 = sphi 0, %s48
      %s50 = sphi 0, %s48
      %s51 = sphi 0, %s50
      %s65 = sphi 0, %s51
      %s69 = sphi 0, %s69
      %s71 = sphi 0, %s69
      %s72 = sphi 0, %s71
      %s86 = sphi 0, %s72
      %s90 = sphi 0, %s90
      %s92 = sphi 0, %s90
      %s93 = sphi 0, %s92
      %s107 = sphi 0, %s93
      %s111 = sphi 0, %s111
      %s113 = sphi 0, %s111
      %s114 = sphi 0, %s113
      %s128 = sphi 0, %s114
      %s134 = sphi 0, %s136
      %s137 = sphi 0, %s134
      %s138 = sphi 0, %s137
      %s154 = sphi 0, %s138
    $region4: #{tpu_custom_call.1} parent=1 // loop_header_branch
      %17 = sbr.rel (%p15) target = $region8
    $region5: #{tpu_custom_call.1} parent=1 // loop_body
      %s19 = ssub.s32 %s14, 1
      %s20 = ssub.s32 %s14, 2
      %s21 = sadd.s32 %s14, 1
      %s22 = ssub.s32 %s14, %s21
      %p23 = scmp.eq.s32.totalorder %s22, 0
      %s25 = sadd.s32 %s24, 1
      %s26 = scalar_select %p23, %s24, %s25
      %p29 = pneg %p23
      %p30 = scmp.eq.s32.totalorder %s14, 1
      %p31 = por %p29, %p30
      %p32 = scmp.ne.s32.totalorder %s24, %s27
      %p33 = scmp.eq.s32.totalorder %s14, 0
      %p34 = por %p32, %p33
      %p35 = scmp.ne.s32.totalorder %s24, %s27
      %p36 = scmp.eq.s32.totalorder %s19, 1
      %p37 = por %p35, %p36
      %p38 = scmp.ne.s32.totalorder %s27, %s28
      %p39 = scmp.eq.s32.totalorder %s19, 0
      %p40 = por %p38, %p39
      %p41 = scmp.ne.s32.totalorder %s27, %s28
      %p42 = scmp.eq.s32.totalorder %s20, 1
      %p43 = por %p41, %p42
      %p45 = scmp.ne.s32.totalorder %s28, %s44
      %p46 = scmp.eq.s32.totalorder %s20, 0
      %p47 = por %p45, %p46
      %s49 = sadd.s32 %s48, 1
      %p52 = scmp.eq.s32.totalorder %s14, 1
      %p53 = scmp.ne.s32.totalorder %s48, %s50
      %p54 = scmp.eq.s32.totalorder %s14, 0
      %p55 = por %p53, %p54
      %p56 = scmp.ne.s32.totalorder %s48, %s50
      %p57 = scmp.eq.s32.totalorder %s19, 1
      %p58 = por %p56, %p57
      %p59 = scmp.ne.s32.totalorder %s50, %s51
      %p60 = scmp.eq.s32.totalorder %s19, 0
      %p61 = por %p59, %p60
      %p62 = scmp.ne.s32.totalorder %s50, %s51
      %p63 = scmp.eq.s32.totalorder %s20, 1
      %p64 = por %p62, %p63
      %p66 = scmp.ne.s32.totalorder %s51, %s65
      %p67 = scmp.eq.s32.totalorder %s20, 0
      %p68 = por %p66, %p67
      %s70 = sadd.s32 %s69, 1
      %p73 = scmp.eq.s32.totalorder %s14, 1
      %p74 = scmp.ne.s32.totalorder %s69, %s71
      %p75 = scmp.eq.s32.totalorder %s14, 0
      %p76 = por %p74, %p75
      %p77 = scmp.ne.s32.totalorder %s69, %s71
      %p78 = scmp.eq.s32.totalorder %s19, 1
      %p79 = por %p77, %p78
      %p80 = scmp.ne.s32.totalorder %s71, %s72
      %p81 = scmp.eq.s32.totalorder %s19, 0
      %p82 = por %p80, %p81
      %p83 = scmp.ne.s32.totalorder %s71, %s72
      %p84 = scmp.eq.s32.totalorder %s20, 1
      %p85 = por %p83, %p84
      %p87 = scmp.ne.s32.totalorder %s72, %s86
      %p88 = scmp.eq.s32.totalorder %s20, 0
      %p89 = por %p87, %p88
      %s91 = sadd.s32 %s90, 1
      %p94 = scmp.eq.s32.totalorder %s14, 1
      %p95 = scmp.ne.s32.totalorder %s90, %s92
      %p96 = scmp.eq.s32.totalorder %s14, 0
      %p97 = por %p95, %p96
      %p98 = scmp.ne.s32.totalorder %s90, %s92
      %p99 = scmp.eq.s32.totalorder %s19, 1
      %p100 = por %p98, %p99
      %p101 = scmp.ne.s32.totalorder %s92, %s93
      %p102 = scmp.eq.s32.totalorder %s19, 0
      %p103 = por %p101, %p102
      %p104 = scmp.ne.s32.totalorder %s92, %s93
      %p105 = scmp.eq.s32.totalorder %s20, 1
      %p106 = por %p104, %p105
      %p108 = scmp.ne.s32.totalorder %s93, %s107
      %p109 = scmp.eq.s32.totalorder %s20, 0
      %p110 = por %p108, %p109
      %s112 = sadd.s32 %s111, 1
      %p115 = scmp.eq.s32.totalorder %s14, 1
      %p116 = scmp.ne.s32.totalorder %s111, %s113
      %p117 = scmp.eq.s32.totalorder %s14, 0
      %p118 = por %p116, %p117
      %p119 = scmp.ne.s32.totalorder %s111, %s113
      %p120 = scmp.eq.s32.totalorder %s19, 1
      %p121 = por %p119, %p120
      %p122 = scmp.ne.s32.totalorder %s113, %s114
      %p123 = scmp.eq.s32.totalorder %s19, 0
      %p124 = por %p122, %p123
      %p125 = scmp.ne.s32.totalorder %s113, %s114
      %p126 = scmp.eq.s32.totalorder %s20, 1
      %p127 = por %p125, %p126
      %p129 = scmp.ne.s32.totalorder %s114, %s128
      %p130 = scmp.eq.s32.totalorder %s20, 0
      %p131 = por %p129, %p130
      %s132 = ssub.s32 %s14, %s21
      %p133 = scmp.eq.s32.totalorder %s132, 0
      %s135 = sadd.s32 %s134, 1
      %s136 = scalar_select %p133, %s134, %s135
      %p139 = pneg %p133
      %p140 = scmp.eq.s32.totalorder %s14, 1
      %p141 = por %p139, %p140
      %p142 = scmp.ne.s32.totalorder %s134, %s137
      %p143 = scmp.eq.s32.totalorder %s14, 0
      %p144 = por %p142, %p143
      %p145 = scmp.ne.s32.totalorder %s134, %s137
      %p146 = scmp.eq.s32.totalorder %s19, 1
      %p147 = por %p145, %p146
      %p148 = scmp.ne.s32.totalorder %s137, %s138
      %p149 = scmp.eq.s32.totalorder %s19, 0
      %p150 = por %p148, %p149
      %p151 = scmp.ne.s32.totalorder %s137, %s138
      %p152 = scmp.eq.s32.totalorder %s20, 1
      %p153 = por %p151, %p152
      %p155 = scmp.ne.s32.totalorder %s138, %s154
      %p156 = scmp.eq.s32.totalorder %s20, 0
      %p157 = por %p155, %p156
      %p158 = scmp.le.s32.totalorder 1, %s14
      %p159 = scmp.lt.s32.totalorder %s14, 3
      %p160 = pnand %p158, %p159
      %p161 = pneg %p160
      // Predicated region
      $region9: #{tpu_custom_call.1} parent=5 // pred_check
        _
      $region10: #{tpu_custom_call.1} parent=5 // pred_check_branch
        %163 = sbr.rel (%p160) target = $region12
      $region11: #{tpu_custom_call.1} parent=5 // pred_region
        %s164 = ssub.s32 %s14, 1
        // Predicated region
        $region13: #{tpu_custom_call.1} parent=11 // pred_check
          %p165 = pneg %p61
        $region14: #{tpu_custom_call.1} parent=11 // pred_check_branch
          %167 = sbr.rel (%p165) target = $region16
        $region15: #{tpu_custom_call.1} parent=11 // pred_region
          _
        $region16: #{tpu_custom_call.1} parent=11 // pred_fallthru
          _
        // Predicated region
        $region17: #{tpu_custom_call.1} parent=11 // pred_check
          %p168 = pneg %p82
        $region18: #{tpu_custom_call.1} parent=11 // pred_check_branch
          %170 = sbr.rel (%p168) target = $region20
        $region19: #{tpu_custom_call.1} parent=11 // pred_region
          _
        $region20: #{tpu_custom_call.1} parent=11 // pred_fallthru
          _
        // Predicated region
        $region21: #{tpu_custom_call.1} parent=11 // pred_check
          %p171 = pneg %p103
        $region22: #{tpu_custom_call.1} parent=11 // pred_check_branch
          %173 = sbr.rel (%p171) target = $region24
        $region23: #{tpu_custom_call.1} parent=11 // pred_region
          _
        $region24: #{tpu_custom_call.1} parent=11 // pred_fallthru
          _
        // Predicated region
        $region25: #{tpu_custom_call.1} parent=11 // pred_check
          %p174 = pneg %p124
        $region26: #{tpu_custom_call.1} parent=11 // pred_check_branch
          %176 = sbr.rel (%p174) target = $region28
        $region27: #{tpu_custom_call.1} parent=11 // pred_region
          _
        $region28: #{tpu_custom_call.1} parent=11 // pred_fallthru
          _
      $region12: #{tpu_custom_call.1} parent=5 // pred_fallthru
        _
      %p177 = scmp.lt.s32.totalorder %s14, 2
      // Predicated region
      $region29: #{tpu_custom_call.1} parent=5 // pred_check
        %p178 = pneg %p177
      $region30: #{tpu_custom_call.1} parent=5 // pred_check_branch
        %180 = sbr.rel (%p178) target = $region32
      $region31: #{tpu_custom_call.1} parent=5 // pred_region
        // Predicated region
        $region33: #{tpu_custom_call.1} parent=31 // pred_check
          %p181 = pneg %p34
        $region34: #{tpu_custom_call.1} parent=31 // pred_check_branch
          %183 = sbr.rel (%p181) target = $region36
        $region35: #{tpu_custom_call.1} parent=31 // pred_region
          %s184 = smul.u32 8, %s14
          %p185 = scmp.lt.s32.totalorder %s184, 15
          %s186 = scalar_select %p185, %s184, 15
          %s187 = smul.addr %s186, 8
          %s188 = scalar_lea.vmem %s0, %s187
          %s189 = smul.u32 8, %s14
        $region36: #{tpu_custom_call.1} parent=31 // pred_fallthru
          _
      $region32: #{tpu_custom_call.1} parent=5 // pred_fallthru
        _
      %p190 = scmp.le.s32.totalorder 1, %s14
      %p191 = scmp.lt.s32.totalorder %s14, 3
      %p192 = pnand %p190, %p191
      %p193 = pneg %p192
      // Predicated region
      $region37: #{tpu_custom_call.1} parent=5 // pred_check
        _
      $region38: #{tpu_custom_call.1} parent=5 // pred_check_branch
        %195 = sbr.rel (%p192) target = $region40
      $region39: #{tpu_custom_call.1} parent=5 // pred_region
        %s196 = ssub.s32 %s14, 1
        %s197 = smul.u32 8, %s19
        %p198 = scmp.lt.s32.totalorder %s197, 15
        %s199 = scalar_select %p198, %s197, 15
        %s200 = smul.addr %s199, 8
        %s201 = scalar_lea.vmem %s0, %s200
        %p202 = pneg %p40
        %p203 = pneg %p37
        %p204 = pneg %p61
        %p205 = pneg %p58
        %p206 = pneg %p82
        %p207 = pneg %p79
        %p208 = pneg %p103
        %p209 = pneg %p100
        %p210 = pneg %p124
        %p211 = pneg %p121
        %p212 = pneg %p150
        %p213 = pneg %p147
        %s214 = sand.u32 %s137, 1
        %s215 = scalar_lea.sflag [#allocation3], %s214
        %s216 = sand.u32 %s137, 1
        %s217 = smul.addr %s216, 8
        %s218 = scalar_lea.vmem [#allocation2], %s217
        %s219 = smul.u32 8, %s19
        %p220 = scmp.lt.s32.totalorder %s219, 15
        %s221 = scalar_select %p220, %s219, 15
        %s222 = smul.addr %s221, 8
        %s223 = scalar_lea.vmem %s0, %s222
        %s224 = smul.u32 8, %s19
        %v225 = vld [vmem:[%s223] sm:$0xff]
        %v226 = vld [vmem:[%s223 + $0x8] sm:$0xff]
        %v227 = vld [vmem:[%s223 + $0x10] sm:$0xff]
        %v228 = vld [vmem:[%s223 + $0x18] sm:$0xff]
        %v229 = vld [vmem:[%s223 + $0x20] sm:$0xff]
        %v230 = vld [vmem:[%s223 + $0x28] sm:$0xff]
        %v231 = vld [vmem:[%s223 + $0x30] sm:$0xff]
        %v232 = vld [vmem:[%s223 + $0x38] sm:$0xff]
        %v233 = vld [vmem:[%s1] sm:$0xff]
        %v234 = vld [vmem:[%s1 + $0x8] sm:$0xff]
        %v235 = vld [vmem:[%s1 + $0x10] sm:$0xff]
        %v236 = vld [vmem:[%s1 + $0x18] sm:$0xff]
        %v237 = vld [vmem:[%s2] sm:$0x1]
        %v239 = vlaneseq
        %v240 = vshrl.u32 %v239, 7
        %v241 = vsub.s32 0, %v240
        %v242 = vrot.slane %v237, %v241
        %vm244 = vcmask 261120
        %v246 = vsel %vm244, %v225, 0
        %v249 = vsel %vm244, %v226, 0
        %v252 = vsel %vm244, %v227, 0
        %v255 = vsel %vm244, %v228, 0
        %v258 = vsel %vm244, %v229, 0
        %v261 = vsel %vm244, %v230, 0
        %v264 = vsel %vm244, %v231, 0
        %v267 = vsel %vm244, %v232, 0
        %269 = vmatprep.subr.mxu0 0.0
        %270 = vmatpush1.msra.mxu0 %v233
        %271 = vmatprep.subr.mxu0 0.0
        %272 = vmatpush1.msra.mxu0 %v234
        %273 = vmatprep.subr.mxu0 0.0
        %274 = vmatpush1.msra.mxu0 %v235
        %275 = vmatprep.subr.mxu0 0.0
        %276 = vmatpush1.msra.mxu0 %v236
        %277 = vmatprep.subr.mxu0 0.0
        %278 = vmatpush1.msra.mxu0 0.0
        %279 = vmatprep.subr.mxu0 0.0
        %280 = vmatpush1.msra.mxu0 0.0
        %281 = vmatprep.subr.mxu0 0.0
        %282 = vmatpush1.msra.mxu0 0.0
        %283 = vmatprep.subr.mxu0 0.0
        %284 = vmatpush1.msra.mxu0 0.0
        %285 = vmatprep.subr.mxu0 0.0
        %286 = vmatpush1.msra.mxu0 0.0
        %287 = vmatprep.subr.mxu0 0.0
        %288 = vmatpush1.msra.mxu0 0.0
        %289 = vmatprep.subr.mxu0 0.0
        %290 = vmatpush1.msra.mxu0 0.0
        %291 = vmatprep.subr.mxu0 0.0
        %292 = vmatpush1.msra.mxu0 0.0
        %293 = vmatprep.subr.mxu0 0.0
        %294 = vmatpush1.msra.mxu0 0.0
        %295 = vmatprep.subr.mxu0 0.0
        %296 = vmatpush1.msra.mxu0 0.0
        %297 = vmatprep.subr.mxu0 0.0
        %298 = vmatpush1.msra.mxu0 0.0
        %299 = vmatprep.subr.mxu0 0.0
        %300 = vmatpush1.msra.mxu0 0.0
        %301 = vmatprep.subr.mxu0 0.0
        %302 = vmatpush1.msra.mxu0 0.0
        %303 = vmatprep.subr.mxu0 0.0
        %304 = vmatpush1.msra.mxu0 0.0
        %305 = vmatprep.subr.mxu0 0.0
        %306 = vmatpush1.msra.mxu0 0.0
        %307 = vmatprep.subr.mxu0 0.0
        %308 = vmatpush1.msra.mxu0 0.0
        %309 = vmatprep.subr.mxu0 0.0
        %310 = vmatpush1.msra.mxu0 0.0
        %311 = vmatprep.subr.mxu0 0.0
        %312 = vmatpush1.msra.mxu0 0.0
        %313 = vmatprep.subr.mxu0 0.0
        %314 = vmatpush1.msra.mxu0 0.0
        %315 = vmatprep.subr.mxu0 0.0
        %316 = vmatpush1.msra.mxu0 0.0
        %317 = vmatprep.subr.mxu0 0.0
        %318 = vmatpush1.msra.mxu0 0.0
        %319 = vmatprep.subr.mxu0 0.0
        %320 = vmatpush1.msra.mxu0 0.0
        %321 = vmatprep.subr.mxu0 0.0
        %322 = vmatpush1.msra.mxu0 0.0
        %323 = vmatprep.subr.mxu0 0.0
        %324 = vmatpush1.msra.mxu0 0.0
        %325 = vmatprep.subr.mxu0 0.0
        %326 = vmatpush1.msra.mxu0 0.0
        %327 = vmatprep.subr.mxu0 0.0
        %328 = vmatpush1.msra.mxu0 0.0
        %329 = vmatprep.subr.mxu0 0.0
        %330 = vmatpush1.msra.mxu0 0.0
        %331 = vmatprep.subr.mxu0 0.0
        %332 = vmatpush1.msra.mxu0 0.0
        %333 = vmatprep.mubr.f32.mxu0 0.0
        %334 = vmatmul.mubr.f32.gmra.mrb[0].mxu0 %v246
        %v335 = vpop.f32.mrb[0].mxu0
        %v336 = vadd.f32 %v242, %v335
        %v337 = vpop.f32.mrb[0].mxu0
        %338 = vmatprep.mubr.f32.mxu0 0.0
        %339 = vmatmul.mubr.f32.gmra.mrb[0].mxu0 %v249
        %v340 = vpop.f32.mrb[0].mxu0
        %v341 = vadd.f32 %v242, %v340
        %v342 = vpop.f32.mrb[0].mxu0
        %343 = vmatprep.mubr.f32.mxu0 0.0
        %344 = vmatmul.mubr.f32.gmra.mrb[0].mxu0 %v252
        %v345 = vpop.f32.mrb[0].mxu0
        %v346 = vadd.f32 %v242, %v345
        %v347 = vpop.f32.mrb[0].mxu0
        %348 = vmatprep.mubr.f32.mxu0 0.0
        %349 = vmatmul.mubr.f32.gmra.mrb[0].mxu0 %v255
        %v350 = vpop.f32.mrb[0].mxu0
        %v351 = vadd.f32 %v242, %v350
        %v352 = vpop.f32.mrb[0].mxu0
        %353 = vmatprep.mubr.f32.mxu0 0.0
        %354 = vmatmul.mubr.f32.gmra.mrb[0].mxu0 %v258
        %v355 = vpop.f32.mrb[0].mxu0
        %v356 = vadd.f32 %v242, %v355
        %v357 = vpop.f32.mrb[0].mxu0
        %358 = vmatprep.mubr.f32.mxu0 0.0
        %359 = vmatmul.mubr.f32.gmra.mrb[0].mxu0 %v261
        %v360 = vpop.f32.mrb[0].mxu0
        %v361 = vadd.f32 %v242, %v360
        %v362 = vpop.f32.mrb[0].mxu0
        %363 = vmatprep.mubr.f32.mxu0 0.0
        %364 = vmatmul.mubr.f32.gmra.mrb[0].mxu0 %v264
        %v365 = vpop.f32.mrb[0].mxu0
        %v366 = vadd.f32 %v242, %v365
        %v367 = vpop.f32.mrb[0].mxu0
        %368 = vmatprep.mubr.f32.mxu0 0.0
        %369 = vmatmul.mubr.f32.gmra.mrb[0].mxu0 %v267
        %v370 = vpop.f32.mrb[0].mxu0
        %v371 = vadd.f32 %v242, %v370
        %v372 = vpop.f32.mrb[0].mxu0
        %373 = vdwg.mxu0
        %v374 = vmax.f32 %v336, 0.0
        %v375 = vmax.f32 %v341, 0.0
        %v376 = vmax.f32 %v346, 0.0
        %v377 = vmax.f32 %v351, 0.0
        %v378 = vmax.f32 %v356, 0.0
        %v379 = vmax.f32 %v361, 0.0
        %v380 = vmax.f32 %v366, 0.0
        %v381 = vmax.f32 %v371, 0.0
        %v382 = vrot.slane %v374, 4
        %v383 = vadd.f32 %v374, %v382
        %v384 = vrot.slane %v383, 2
        %v385 = vadd.f32 %v383, %v384
        %v386 = vrot.slane %v385, 1
        %v387 = vadd.f32 %v385, %v386
        %v388 = vrot.slane %v375, 4
        %v389 = vadd.f32 %v375, %v388
        %v390 = vrot.slane %v389, 2
        %v391 = vadd.f32 %v389, %v390
        %v392 = vrot.slane %v391, 1
        %v393 = vadd.f32 %v391, %v392
        %v394 = vrot.slane %v376, 4
        %v395 = vadd.f32 %v376, %v394
        %v396 = vrot.slane %v395, 2
        %v397 = vadd.f32 %v395, %v396
        %v398 = vrot.slane %v397, 1
        %v399 = vadd.f32 %v397, %v398
        %v400 = vrot.slane %v377, 4
        %v401 = vadd.f32 %v377, %v400
        %v402 = vrot.slane %v401, 2
        %v403 = vadd.f32 %v401, %v402
        %v404 = vrot.slane %v403, 1
        %v405 = vadd.f32 %v403, %v404
        %v406 = vrot.slane %v378, 4
        %v407 = vadd.f32 %v378, %v406
        %v408 = vrot.slane %v407, 2
        %v409 = vadd.f32 %v407, %v408
        %v410 = vrot.slane %v409, 1
        %v411 = vadd.f32 %v409, %v410
        %v412 = vrot.slane %v379, 4
        %v413 = vadd.f32 %v379, %v412
        %v414 = vrot.slane %v413, 2
        %v415 = vadd.f32 %v413, %v414
        %v416 = vrot.slane %v415, 1
        %v417 = vadd.f32 %v415, %v416
        %v418 = vrot.slane %v380, 4
        %v419 = vadd.f32 %v380, %v418
        %v420 = vrot.slane %v419, 2
        %v421 = vadd.f32 %v419, %v420
        %v422 = vrot.slane %v421, 1
        %v423 = vadd.f32 %v421, %v422
        %v424 = vrot.slane %v381, 4
        %v425 = vadd.f32 %v381, %v424
        %v426 = vrot.slane %v425, 2
        %v427 = vadd.f32 %v425, %v426
        %v428 = vrot.slane %v427, 1
        %v429 = vadd.f32 %v427, %v428
        %v430 = vld [vmem:[%s3] sm:$0xff]
        %v431 = vld [vmem:[%s3 + $0x8] sm:$0xff]
        %v432 = vld [vmem:[%s3 + $0x10] sm:$0xff]
        %v433 = vld [vmem:[%s3 + $0x18] sm:$0xff]
        %v434 = vld [vmem:[%s3 + $0x20] sm:$0xff]
        %v435 = vld [vmem:[%s3 + $0x28] sm:$0xff]
        %v436 = vld [vmem:[%s3 + $0x30] sm:$0xff]
        %v437 = vld [vmem:[%s3 + $0x38] sm:$0xff]
        %v438 = vld [vmem:[%s3 + $0x40] sm:$0xff]
        %v439 = vld [vmem:[%s3 + $0x48] sm:$0xff]
        %v440 = vld [vmem:[%s3 + $0x50] sm:$0xff]
        %v441 = vld [vmem:[%s3 + $0x58] sm:$0xff]
        %v442 = vld [vmem:[%s3 + $0x60] sm:$0xff]
        %v443 = vld [vmem:[%s3 + $0x68] sm:$0xff]
        %v444 = vld [vmem:[%s3 + $0x70] sm:$0xff]
        %v445 = vld [vmem:[%s3 + $0x78] sm:$0xff]
        %v446 = vld [vmem:[%s4] sm:$0x1]
        %v448 = vlaneseq
        %v449 = vshrl.u32 %v448, 7
        %v450 = vsub.s32 0, %v449
        %v451 = vrot.slane %v446, %v450
        %vm461 = vcmask 1041409
        %v462 = vsel %vm461, %v393, %v387
        %vm463 = vcmask 1042434
        %v464 = vsel %vm463, %v399, %v462
        %vm465 = vcmask 1043459
        %v466 = vsel %vm465, %v405, %v464
        %vm467 = vcmask 1044484
        %v468 = vsel %vm467, %v411, %v466
        %vm469 = vcmask 1045509
        %v470 = vsel %vm469, %v417, %v468
        %vm471 = vcmask 1046534
        %v472 = vsel %vm471, %v423, %v470
        %vm473 = vcmask 1047559
        %v474 = vsel %vm473, %v429, %v472
        %476 = vmatprep.subr.mxu0 0.0
        %477 = vmatpush1.msra.mxu0 %v430
        %478 = vmatprep.subr.mxu0 0.0
        %479 = vmatpush1.msra.mxu0 %v431
        %480 = vmatprep.subr.mxu0 0.0
        %481 = vmatpush1.msra.mxu0 %v432
        %482 = vmatprep.subr.mxu0 0.0
        %483 = vmatpush1.msra.mxu0 %v433
        %484 = vmatprep.subr.mxu0 0.0
        %485 = vmatpush1.msra.mxu0 %v434
        %486 = vmatprep.subr.mxu0 0.0
        %487 = vmatpush1.msra.mxu0 %v435
        %488 = vmatprep.subr.mxu0 0.0
        %489 = vmatpush1.msra.mxu0 %v436
        %490 = vmatprep.subr.mxu0 0.0
        %491 = vmatpush1.msra.mxu0 %v437
        %492 = vmatprep.subr.mxu0 0.0
        %493 = vmatpush1.msra.mxu0 %v438
        %494 = vmatprep.subr.mxu0 0.0
        %495 = vmatpush1.msra.mxu0 %v439
        %496 = vmatprep.subr.mxu0 0.0
        %497 = vmatpush1.msra.mxu0 %v440
        %498 = vmatprep.subr.mxu0 0.0
        %499 = vmatpush1.msra.mxu0 %v441
        %500 = vmatprep.subr.mxu0 0.0
        %501 = vmatpush1.msra.mxu0 %v442
        %502 = vmatprep.subr.mxu0 0.0
        %503 = vmatpush1.msra.mxu0 %v443
        %504 = vmatprep.subr.mxu0 0.0
        %505 = vmatpush1.msra.mxu0 %v444
        %506 = vmatprep.subr.mxu0 0.0
        %507 = vmatpush1.msra.mxu0 %v445
        %508 = vmatprep.subr.mxu0 0.0
        %509 = vmatpush1.msra.mxu0 0.0
        %510 = vmatprep.subr.mxu0 0.0
        %511 = vmatpush1.msra.mxu0 0.0
        %512 = vmatprep.subr.mxu0 0.0
        %513 = vmatpush1.msra.mxu0 0.0
        %514 = vmatprep.subr.mxu0 0.0
        %515 = vmatpush1.msra.mxu0 0.0
        %516 = vmatprep.subr.mxu0 0.0
        %517 = vmatpush1.msra.mxu0 0.0
        %518 = vmatprep.subr.mxu0 0.0
        %519 = vmatpush1.msra.mxu0 0.0
        %520 = vmatprep.subr.mxu0 0.0
        %521 = vmatpush1.msra.mxu0 0.0
        %522 = vmatprep.subr.mxu0 0.0
        %523 = vmatpush1.msra.mxu0 0.0
        %524 = vmatprep.subr.mxu0 0.0
        %525 = vmatpush1.msra.mxu0 0.0
        %526 = vmatprep.subr.mxu0 0.0
        %527 = vmatpush1.msra.mxu0 0.0
        %528 = vmatprep.subr.mxu0 0.0
        %529 = vmatpush1.msra.mxu0 0.0
        %530 = vmatprep.subr.mxu0 0.0
        %531 = vmatpush1.msra.mxu0 0.0
        %532 = vmatprep.subr.mxu0 0.0
        %533 = vmatpush1.msra.mxu0 0.0
        %534 = vmatprep.subr.mxu0 0.0
        %535 = vmatpush1.msra.mxu0 0.0
        %536 = vmatprep.subr.mxu0 0.0
        %537 = vmatpush1.msra.mxu0 0.0
        %538 = vmatprep.subr.mxu0 0.0
        %539 = vmatpush1.msra.mxu0 0.0
        %540 = vmatprep.mubr.f32.mxu0 0.0
        %541 = vmatmul.mubr.f32.gmra.mrb[0].mxu0 %v474
        %v542 = vpop.f32.mrb[0].mxu0
        %v543 = vadd.f32 %v451, %v542
        %v544 = vpop.f32.mrb[0].mxu0
        %545 = vdwg.mxu0
        %546 = vst [vmem:[%s218] sm:$0xff] %v543
        %s547 = sand.u32 %s137, 1
        %s548 = scalar_lea.sflag [#allocation3], %s547
        %s549 = sand.u32 %s137, 1
        %s550 = smul.addr %s549, 8
        %s551 = scalar_lea.vmem [#allocation2], %s550
        // Predicated region
        $region41: #{tpu_custom_call.1} parent=39 // pred_check
          %p552 = pneg %p147
        $region42: #{tpu_custom_call.1} parent=39 // pred_check_branch
          %554 = sbr.rel (%p552) target = $region44
        $region43: #{tpu_custom_call.1} parent=39 // pred_region
          %s556 = ssub.s32 128, 128
          %557 = vsyncadd %s548, %s556
          %s558 = smul.addr %s19, 128
          %s559 = scalar_lea.hbm %s5, %s558
          %s561 = sshll.u32 %s551, 4
          %s562 = int_to_ptr.vmem [resolvable:$true] %s561
          %564 = dma.vmem_to_hbm [thread:$0]  %s562, 128, %s559, %s548
        $region44: #{tpu_custom_call.1} parent=39 // pred_fallthru
          _
      $region40: #{tpu_custom_call.1} parent=5 // pred_fallthru
        _
      %p565 = scmp.le.s32.totalorder 2, %s14
      // Predicated region
      $region45: #{tpu_custom_call.1} parent=5 // pred_check
        %p566 = pneg %p565
      $region46: #{tpu_custom_call.1} parent=5 // pred_check_branch
        %568 = sbr.rel (%p566) target = $region48
      $region47: #{tpu_custom_call.1} parent=5 // pred_region
        %s569 = ssub.s32 %s14, 2
        // Predicated region
        $region49: #{tpu_custom_call.1} parent=47 // pred_check
          %p570 = pneg %p153
        $region50: #{tpu_custom_call.1} parent=47 // pred_check_branch
          %572 = sbr.rel (%p570) target = $region52
        $region51: #{tpu_custom_call.1} parent=47 // pred_region
          %s573 = sand.u32 %s138, 1
          %s574 = scalar_lea.sflag [#allocation3], %s573
          %s575 = sand.u32 %s138, 1
          %s576 = smul.addr %s575, 8
          %s577 = scalar_lea.vmem [#allocation2], %s576
          %578 = dma.done %s574, 128
        $region52: #{tpu_custom_call.1} parent=47 // pred_fallthru
          _
      $region48: #{tpu_custom_call.1} parent=5 // pred_fallthru
        _
    $region6: #{tpu_custom_call.1} parent=1 // loop_footer
      %s18 = sadd.s32 1, %s14
    $region7: #{tpu_custom_call.1} parent=1 // loop_footer_branch
      %13 = sbr.rel target = $region3
    $region8: #{tpu_custom_call.1} parent=1 // loop_exit
      _
    %579 = vsyncpa [#allocation3], 1
    %s580 = scalar_lea.sflag [#allocation3], 1
    %581 = vsyncpa %s580, 1

</llo_original>
